<compile_context>
chip_gen: v6e
topology: v6e:2x2x1
jax: 0.10.0
libtpu: 0.0.40
codegen_flags: <defaults>
</compile_context>

<pallas_src>
import math

import jax
import jax.numpy as jnp
from jax.experimental import pallas as pl
from jax.experimental.pallas import tpu as pltpu


def _linear_kernel(x_ref, w_ref, b_ref, o_ref):
    # x_ref: [F_in, Bt]    — batch on lanes (lane-dense), features on sublanes
    # w_ref: [F_out, F_in] — PyTorch nn.Linear layout, untransposed
    # b_ref: [F_out, 1]
    # o_ref: [F_out, Bt]
    x = x_ref[...]
    w = w_ref[...]
    f_in = x_ref.shape[0]

    # Unrolled VPU FMA: y[o, b] = sum_k w[o, k] * x[k, b] + bias[o].
    # w[:, k:k+1] is an [F_out, 1] column (lane-broadcast) and x[k:k+1, :] is
    # a [1, Bt] row (sublane-broadcast): each term is a vmul+vadd, no MXU.
    acc = w[:, 0:1] * x[0:1, :]
    for k in range(1, f_in):           # static trip count (3) -> fully unrolled
        acc = acc + w[:, k:k + 1] * x[k:k + 1, :]
    o_ref[...] = (acc + b_ref[...]).astype(o_ref.dtype)


def linear_pallas(x, weight, bias, *, tile_b=1024):
    """y = x @ weight.T + bias, matching torch.nn.Linear semantics.

    x:      [B, F_in]     float32
    weight: [F_out, F_in] float32 (PyTorch layout)
    bias:   [F_out]       float32
    returns [B, F_out]
    """
    B, F_in = x.shape
    F_out = weight.shape[0]

    x_t = x.T                          # [F_in, B]  — batch on the lane axis
    b_col = bias.reshape(F_out, 1)     # [F_out, 1]
    out_shape = jax.ShapeDtypeStruct((F_out, B), x.dtype)

    if B >= 2 * tile_b and B % tile_b == 0:
        # Batch-tiled path for non-trivial B: lane-axis tiles of tile_b
        # (multiple of 128), marked "parallel" so v7x's two TensorCores split
        # the grid.  tile_b=1024 f32 -> ~12 KiB per in/out buffer, trivially
        # inside VMEM even with double-buffering.
        y_t = pl.pallas_call(
            _linear_kernel,
            out_shape=out_shape,
            grid=(B // tile_b,),
            in_specs=[
                pl.BlockSpec((F_in, tile_b), lambda i: (0, i)),
                pl.BlockSpec((F_out, F_in), lambda i: (0, 0)),
                pl.BlockSpec((F_out, 1), lambda i: (0, 0)),
            ],
            out_specs=pl.BlockSpec((F_out, tile_b), lambda i: (0, i)),
            compiler_params=pltpu.CompilerParams(
                dimension_semantics=("parallel",)),
        )(x_t, weight, b_col)
    else:
        # Small batch (the Block3 test shape): single grid-less invocation,
        # whole operands resident in VMEM — no per-step grid bookkeeping.
        y_t = pl.pallas_call(
            _linear_kernel,
            out_shape=out_shape,
            in_specs=[
                pl.BlockSpec(memory_space=pltpu.MemorySpace.VMEM),
                pl.BlockSpec(memory_space=pltpu.MemorySpace.VMEM),
                pl.BlockSpec(memory_space=pltpu.MemorySpace.VMEM),
            ],
            out_specs=pl.BlockSpec(memory_space=pltpu.MemorySpace.VMEM),
        )(x_t, weight, b_col)

    return y_t.T                       # back to nn.Linear's [B, F_out]


def init_linear_params(key, in_features, out_features):
    """Deterministic init mimicking torch.nn.Linear defaults (Kaiming-uniform)."""
    k_w, k_b = jax.random.split(key)
    bound = 1.0 / math.sqrt(in_features)
    weight = jax.random.uniform(
        k_w, (out_features, in_features), jnp.float32, -bound, bound)
    bias = jax.random.uniform(
        k_b, (out_features,), jnp.float32, -bound, bound)
    return weight, bias


if __name__ == "__main__":
    key = jax.random.PRNGKey(0)
    k_x, k_p, k_x2 = jax.random.split(key, 3)

    F = 3                              # Linear(3, 3)
    weight, bias = init_linear_params(k_p, F, F)

    # Small-batch path (the Block3 spec shape).
    B = 8
    x = jax.random.normal(k_x, (B, F), jnp.float32)
    y = jax.block_until_ready(linear_pallas(x, weight, bias))
    y_ref = x @ weight.T + bias
    assert y.shape == (B, F)
    assert jnp.allclose(y, y_ref, atol=1e-5, rtol=1e-5)

    # Batch-tiled, megacore-parallel path (exercised once for coverage).
    B2 = 2048
    x2 = jax.random.normal(k_x2, (B2, F), jnp.float32)
    y2 = jax.block_until_ready(linear_pallas(x2, weight, bias))
    y2_ref = x2 @ weight.T + bias
    assert y2.shape == (B2, F)
    assert jnp.allclose(y2, y2_ref, atol=1e-5, rtol=1e-5)

    print("KERNEL_OK")
</pallas_src>

<mosaic_0001>
module attributes {stable_mosaic.version = 11 : i64} {
  func.func @_linear_kernel(%arg0: memref<3x8xf32, #tpu.memory_space<vmem>>, %arg1: memref<3x3xf32, #tpu.memory_space<vmem>>, %arg2: memref<3x1xf32, #tpu.memory_space<vmem>>, %arg3: memref<3x8xf32, #tpu.memory_space<vmem>>) attributes {dimension_semantics = [], scalar_prefetch = 0 : i64, scratch_operands = 0 : i64, tpu.core_type = #tpu.core_type<tc>} {
    %c0 = arith.constant 0 : index
    %c0_0 = arith.constant 0 : index
    %0 = vector.load %arg0[%c0, %c0_0] : memref<3x8xf32, #tpu.memory_space<vmem>>, vector<3x8xf32>
    %c0_1 = arith.constant 0 : index
    %c0_2 = arith.constant 0 : index
    %1 = vector.load %arg1[%c0_1, %c0_2] : memref<3x3xf32, #tpu.memory_space<vmem>>, vector<3x3xf32>
    %2 = vector.extract_strided_slice %1 {offsets = [0, 0], sizes = [3, 1], strides = [1, 1]} : vector<3x3xf32> to vector<3x1xf32>
    %3 = vector.extract_strided_slice %0 {offsets = [0, 0], sizes = [1, 8], strides = [1, 1]} : vector<3x8xf32> to vector<1x8xf32>
    %4 = vector.broadcast %2 : vector<3x1xf32> to vector<3x8xf32>
    %5 = vector.broadcast %3 : vector<1x8xf32> to vector<3x8xf32>
    %6 = arith.mulf %4, %5 : vector<3x8xf32>
    %7 = vector.extract_strided_slice %1 {offsets = [0, 1], sizes = [3, 1], strides = [1, 1]} : vector<3x3xf32> to vector<3x1xf32>
    %8 = vector.extract_strided_slice %0 {offsets = [1, 0], sizes = [1, 8], strides = [1, 1]} : vector<3x8xf32> to vector<1x8xf32>
    %9 = vector.broadcast %7 : vector<3x1xf32> to vector<3x8xf32>
    %10 = vector.broadcast %8 : vector<1x8xf32> to vector<3x8xf32>
    %11 = arith.mulf %9, %10 : vector<3x8xf32>
    %12 = arith.addf %6, %11 : vector<3x8xf32>
    %13 = vector.extract_strided_slice %1 {offsets = [0, 2], sizes = [3, 1], strides = [1, 1]} : vector<3x3xf32> to vector<3x1xf32>
    %14 = vector.extract_strided_slice %0 {offsets = [2, 0], sizes = [1, 8], strides = [1, 1]} : vector<3x8xf32> to vector<1x8xf32>
    %15 = vector.broadcast %13 : vector<3x1xf32> to vector<3x8xf32>
    %16 = vector.broadcast %14 : vector<1x8xf32> to vector<3x8xf32>
    %17 = arith.mulf %15, %16 : vector<3x8xf32>
    %18 = arith.addf %12, %17 : vector<3x8xf32>
    %c0_3 = arith.constant 0 : index
    %c0_4 = arith.constant 0 : index
    %19 = vector.load %arg2[%c0_3, %c0_4] : memref<3x1xf32, #tpu.memory_space<vmem>>, vector<3x1xf32>
    %20 = vector.broadcast %19 : vector<3x1xf32> to vector<3x8xf32>
    %21 = arith.addf %18, %20 : vector<3x8xf32>
    %c0_5 = arith.constant 0 : index
    %c0_6 = arith.constant 0 : index
    %22 = vector.load %arg3[%c0_5, %c0_6] : memref<3x8xf32, #tpu.memory_space<vmem>>, vector<3x8xf32>
    tpu.vector_store %arg3[%c0_5, %c0_6], %21 {strides = array<i32>} : memref<3x8xf32, #tpu.memory_space<vmem>>, vector<3x8xf32>,
    return
  }
}

</mosaic_0001>

<llo_original>
// kernel: tpu_custom_call.1
$region0: #{tpu_custom_call.1}
  #allocation0 [shape = 'u32[]', space=smem, size = 0x4, offset = 0x4, fixed_abs, tag = 'smem constant byte address 0x4 - core index']
  #allocation1 [shape = 'u32[144,128]{1,0:T(1,128)}', space=vmem, size = 0x12000, scoped, tag = 'internal scratch']
  %s0 = inlined_call_operand.vmem [shape: f32[3,8], index: 0, kind: input, shape index: {}]
  %s1 = inlined_call_operand.hbm [shape: f32[3,3], index: 1, kind: input, shape index: {}]
  %s2 = inlined_call_operand.vmem [shape: f32[3,1], index: 2, kind: input, shape index: {}]
  %s3 = inlined_call_operand.hbm [shape: f32[3,8], index: 3, kind: output, shape index: {}]
  %s4 = sld [smem:[#allocation0]]
  $region26: #{tpu_custom_call.1} parent=0
    _
  %s6 = ssub.s32 1, %s4
  %s7 = scalar_select 0, %s6, %s4
  $region1: #{tpu_custom_call.1} parent=0
    #allocation2 [shape = 'u8[2048]{0}', space=vmem, size = 0x800, scoped, tag = 'input window, operand 1, single buffered']
    #allocation3 [shape = 's32[1]{0}', space=sflag, size = 0x4, scoped, tag = 'scoped memory for tpu_custom_call.1']
    #allocation4 [shape = 's32[1]{0}', space=sflag, size = 0x4, scoped, tag = 'scoped memory for tpu_custom_call.1']
    #allocation5 [shape = 'u8[2048]{0}', space=vmem, size = 0x800, scoped, tag = 'output window, operand 0, single buffered']
    %8 = vsyncpa [#allocation3], 0
    %9 = vsyncpa [#allocation4], 0
    // Predicated region
    $region2: #{tpu_custom_call.1} parent=1 // pred_check
      _
    $region3: #{tpu_custom_call.1} parent=1 // pred_check_branch
      %11 = sbr.rel (0) target = $region5
    $region4: #{tpu_custom_call.1} parent=1 // pred_region
      _
    $region5: #{tpu_custom_call.1} parent=1 // pred_fallthru
      _
    // Predicated region
    $region6: #{tpu_custom_call.1} parent=1 // pred_check
      _
    $region7: #{tpu_custom_call.1} parent=1 // pred_check_branch
      %13 = sbr.rel (0) target = $region9
    $region8: #{tpu_custom_call.1} parent=1 // pred_region
      %s15 = ssub.s32 64, 64
      %16 = vsyncadd [#allocation3], %s15
      %s18 = sshll.u32 [#allocation2], 4
      %s19 = int_to_ptr.vmem [resolvable:$true] %s18
      %21 = dma.hbm_to_vmem [thread:$0]  %s1, 64, %s19, [#allocation3]
    $region9: #{tpu_custom_call.1} parent=1 // pred_fallthru
      _
    // Predicated region
    $region10: #{tpu_custom_call.1} parent=1 // pred_check
      _
    $region11: #{tpu_custom_call.1} parent=1 // pred_check_branch
      %23 = sbr.rel (0) target = $region13
    $region12: #{tpu_custom_call.1} parent=1 // pred_region
      _
    $region13: #{tpu_custom_call.1} parent=1 // pred_fallthru
      _
    // Predicated region
    $region14: #{tpu_custom_call.1} parent=1 // pred_check
      _
    $region15: #{tpu_custom_call.1} parent=1 // pred_check_branch
      %25 = sbr.rel (0) target = $region17
    $region16: #{tpu_custom_call.1} parent=1 // pred_region
      %26 = dma.done [#allocation3], 64
    $region17: #{tpu_custom_call.1} parent=1 // pred_fallthru
      _
    %v27 = vld [vmem:[%s0] sm:$0x7]
    %v28 = vld [vmem:[#allocation2] sm:$0x7]
    %30 = vset.pattern.permute.xlu0 0
    %31 = vperm.xlu0 %30, %v28
    %v32 = vpop.permute.xlu0 %31
    %v34 = vlaneseq
    %v35 = vshrl.u32 %v34, 7
    %v36 = vsub.s32 0, %v35
    %v37 = vrot.slane %v27, %v36
    %v38 = vmul.f32 %v32, %v37
    %39 = vset.pattern.permute.xlu0 1
    %40 = vperm.xlu0 %39, %v28
    %v41 = vpop.permute.xlu0 %40
    %v43 = vlaneseq
    %v44 = vshrl.u32 %v43, 7
    %v45 = vsub.s32 1, %v44
    %v46 = vrot.slane %v27, %v45
    %v47 = vmul.f32 %v41, %v46
    %v48 = vadd.f32 %v38, %v47
    %49 = vset.pattern.permute.xlu0 2
    %50 = vperm.xlu0 %49, %v28
    %v51 = vpop.permute.xlu0 %50
    %v53 = vlaneseq
    %v54 = vshrl.u32 %v53, 7
    %v55 = vsub.s32 2, %v54
    %v56 = vrot.slane %v27, %v55
    %v57 = vmul.f32 %v51, %v56
    %v58 = vadd.f32 %v48, %v57
    %v59 = vld [vmem:[%s2] sm:$0x7]
    %61 = vset.pattern.permute.xlu0 0
    %62 = vperm.xlu0 %61, %v59
    %v63 = vpop.permute.xlu0 %62
    %v65 = vadd.f32 %v58, %v63
    %vm66 = vcmask 59392
    %67 = vst.msk [vmem:[#allocation5] sm:$0x7] %vm66, %v65
    // Predicated region
    $region18: #{tpu_custom_call.1} parent=1 // pred_check
      _
    $region19: #{tpu_custom_call.1} parent=1 // pred_check_branch
      %69 = sbr.rel (0) target = $region21
    $region20: #{tpu_custom_call.1} parent=1 // pred_region
      %s71 = ssub.s32 64, 64
      %72 = vsyncadd [#allocation4], %s71
      %s74 = sshll.u32 [#allocation5], 4
      %s75 = int_to_ptr.vmem [resolvable:$true] %s74
      %77 = dma.vmem_to_hbm [thread:$0]  %s75, 64, %s3, [#allocation4]
    $region21: #{tpu_custom_call.1} parent=1 // pred_fallthru
      _
    // Predicated region
    $region22: #{tpu_custom_call.1} parent=1 // pred_check
      _
    $region23: #{tpu_custom_call.1} parent=1 // pred_check_branch
      %79 = sbr.rel (0) target = $region25
    $region24: #{tpu_custom_call.1} parent=1 // pred_region
      %80 = dma.done [#allocation4], 64
    $region25: #{tpu_custom_call.1} parent=1 // pred_fallthru
      _
    %81 = vsyncpa [#allocation3], 1
    %82 = vsyncpa [#allocation4], 1

</llo_original>
